<compile_context>
chip_gen: v7x
topology: tpu7x:2x2x1
jax: 0.10.0
libtpu: 0.0.40
codegen_flags: <defaults>
</compile_context>

<pallas_src>
import numpy as np
import jax
import jax.numpy as jnp
from jax.experimental import pallas as pl
from jax.experimental.pallas import tpu as pltpu


def _rel_rois_kernel(sbj_ref, obj_ref, rel_ref):
    """rel_ref[c, i, j] = min/max(sbj_roi[i, c], obj_roi[j, c]).

    sbj_ref: (tm, 5)  subject rois for this tile (rows vary along sublanes)
    obj_ref: (5, tn)  object rois for this tile, transposed (cols along lanes)
    rel_ref: (5, tm, tn) channel-major union rois
    Channels 0..2 (batch idx, x1, y1) -> min; channels 3..4 (x2, y2) -> max.
    Column 0 (batch index) is identical for sbj/obj so min() is exact.
    """
    for c in range(5):
        s = sbj_ref[:, c:c + 1]       # (tm, 1)
        o = obj_ref[c:c + 1, :]       # (1, tn)
        if c < 3:
            rel_ref[c, :, :] = jnp.minimum(s, o)
        else:
            rel_ref[c, :, :] = jnp.maximum(s, o)


def _round_up(x, m):
    return (x + m - 1) // m * m


def _rel_rois_pairs(det_rois):
    """Dense channel-major (5, n_pad, n_pad) union-roi slab via tiled Pallas."""
    n = det_rois.shape[0]
    lane = 128
    tile = 256
    n_pad = _round_up(n, tile) if n > tile else _round_up(n, lane)
    tm = tn = min(tile, n_pad)

    rois_pad = jnp.zeros((n_pad, 5), jnp.float32).at[:n].set(
        det_rois.astype(jnp.float32))
    rois_pad_t = rois_pad.T                        # (5, n_pad)

    grid = (n_pad // tm, n_pad // tn)
    rel_dense = pl.pallas_call(
        _rel_rois_kernel,
        out_shape=jax.ShapeDtypeStruct((5, n_pad, n_pad), jnp.float32),
        grid_spec=pltpu.PrefetchScalarGridSpec(
            num_scalar_prefetch=0,
            grid=grid,
            in_specs=[
                pl.BlockSpec((tm, 5), lambda i, j: (i, 0)),   # subject rows
                pl.BlockSpec((5, tn), lambda i, j: (0, j)),   # object cols (T)
            ],
            out_specs=pl.BlockSpec((5, tm, tn), lambda i, j: (0, i, j)),
        ),
        compiler_params=pltpu.CompilerParams(
            dimension_semantics=("parallel", "parallel"),
            vmem_limit_bytes=32 * 1024 * 1024),
    )(rois_pad, rois_pad_t)
    return rel_dense, n_pad


def single_scale_relpn_forward(det_rois, det_labels, det_scores, im_info):
    """Inference-path forward of single_scale_relpn_outputs."""
    n = det_rois.shape[0]
    im_scale = im_info[:, 2][0]

    # --- N^2 pairwise work (rois_union) on TPU ---
    rel_dense, n_pad = _rel_rois_pairs(det_rois)

    # --- O(N) glue: pair index bookkeeping (numpy, as in the reference) ---
    sbj_inds = np.repeat(np.arange(n), n)
    obj_inds = np.tile(np.arange(n), n)
    if n > 1:
        mask = np.ones(sbj_inds.shape[0], dtype=bool)
        for i in range(n):
            mask[i + n * i] = False
        keeps = np.where(mask)[0]
        sbj_inds = sbj_inds[keeps]
        obj_inds = obj_inds[keeps]
    sbj_j = jnp.asarray(sbj_inds, dtype=jnp.int32)
    obj_j = jnp.asarray(obj_inds, dtype=jnp.int32)

    # Single fused gather on the dense slab (diagonal drop + unpad in one go).
    flat_keep = sbj_j * n_pad + obj_j
    rel_rois = jnp.take(rel_dense.reshape(5, n_pad * n_pad),
                        flat_keep, axis=1).T                     # (P, 5)

    # Broadcast-only outputs: scale once over N rows, then gather.
    det_rois_f = det_rois.astype(jnp.float32)
    boxes = det_rois_f[:, 1:5] / im_scale
    sbj_rois = jnp.take(det_rois_f, sbj_j, axis=0)
    obj_rois = jnp.take(det_rois_f, obj_j, axis=0)
    sbj_boxes = jnp.take(boxes, sbj_j, axis=0)
    obj_boxes = jnp.take(boxes, obj_j, axis=0)
    sbj_labels = jnp.take(det_labels, sbj_j, axis=0)
    obj_labels = jnp.take(det_labels, obj_j, axis=0)
    sbj_scores = jnp.take(det_scores, sbj_j, axis=0)
    obj_scores = jnp.take(det_scores, obj_j, axis=0)

    return_dict = {
        'det_rois': det_rois,
        'sbj_inds': sbj_inds,
        'obj_inds': obj_inds,
        'sbj_rois': sbj_rois,
        'obj_rois': obj_rois,
        'rel_rois': rel_rois,
        'sbj_labels': sbj_labels,
        'obj_labels': obj_labels,
        'sbj_scores': sbj_scores,
        'obj_scores': obj_scores,
        'fg_size': jnp.array([int(sbj_inds.shape[0])], dtype=jnp.int32),
        # intermediates (used by ovlp filter / spt_feat branches in reference)
        'sbj_boxes': sbj_boxes,
        'obj_boxes': obj_boxes,
        # cfg.MODEL.USE_FREQ_BIAS branch:
        'all_sbj_labels_int32': sbj_labels.astype(jnp.int32) - 1,
        'all_obj_labels_int32': obj_labels.astype(jnp.int32) - 1,
    }
    return return_dict


if __name__ == "__main__":
    key = jax.random.PRNGKey(0)
    k1, k2, k3, k4 = jax.random.split(key, 4)

    N = 8
    xy1 = jax.random.uniform(k1, (N, 2), minval=0.0, maxval=200.0)
    wh = jax.random.uniform(k2, (N, 2), minval=10.0, maxval=100.0)
    boxes = jnp.concatenate([xy1, xy1 + wh], axis=1)
    det_rois = jnp.concatenate(
        [jnp.zeros((N, 1), jnp.float32), boxes], axis=1).astype(jnp.float32)
    det_labels = jax.random.randint(k3, (N,), 1, 10).astype(jnp.float32)
    det_scores = jax.random.uniform(k4, (N,), dtype=jnp.float32)
    im_info = jnp.array([[600.0, 800.0, 1.5]], dtype=jnp.float32)  # (h, w, scale)

    out = single_scale_relpn_forward(det_rois, det_labels, det_scores, im_info)
    jax.block_until_ready(out)

    # --- lightweight numpy reference check ---
    dr = np.asarray(det_rois)
    dl = np.asarray(det_labels)
    ds = np.asarray(det_scores)
    scale = float(np.asarray(im_info)[:, 2][0])
    si = np.repeat(np.arange(N), N)
    oi = np.tile(np.arange(N), N)
    m = np.ones(si.shape[0], dtype=bool)
    for i in range(N):
        m[i + N * i] = False
    si, oi = si[m], oi[m]
    sr, orr = dr[si], dr[oi]
    rel_ref = np.concatenate(
        [sr[:, :1],
         np.minimum(sr[:, 1:3], orr[:, 1:3]),
         np.maximum(sr[:, 3:5], orr[:, 3:5])], axis=1)
    assert np.allclose(np.asarray(out['rel_rois']), rel_ref, atol=1e-5)
    assert np.allclose(np.asarray(out['sbj_rois']), sr, atol=1e-6)
    assert np.allclose(np.asarray(out['obj_rois']), orr, atol=1e-6)
    assert np.allclose(np.asarray(out['sbj_boxes']), sr[:, 1:] / scale, atol=1e-5)
    assert np.allclose(np.asarray(out['obj_boxes']), orr[:, 1:] / scale, atol=1e-5)
    assert np.allclose(np.asarray(out['sbj_labels']), dl[si])
    assert np.allclose(np.asarray(out['obj_labels']), dl[oi])
    assert np.allclose(np.asarray(out['sbj_scores']), ds[si], atol=1e-6)
    assert np.allclose(np.asarray(out['obj_scores']), ds[oi], atol=1e-6)
    assert np.allclose(np.asarray(out['all_sbj_labels_int32']),
                       dl[si].astype(np.int32) - 1)
    assert int(out['fg_size'][0]) == si.shape[0]

    print("KERNEL_OK")
</pallas_src>

<mosaic_0001>
module attributes {stable_mosaic.version = 11 : i64} {
  func.func @_rel_rois_kernel(%arg0: i32, %arg1: i32, %arg2: memref<128x5xf32, #tpu.memory_space<vmem>>, %arg3: memref<5x128xf32, #tpu.memory_space<vmem>>, %arg4: memref<5x128x128xf32, #tpu.memory_space<vmem>>) attributes {dimension_semantics = [#tpu.dimension_semantics<parallel>, #tpu.dimension_semantics<parallel>], iteration_bounds = array<i64: 1, 1>, scalar_prefetch = 0 : i64, scratch_operands = 0 : i64, tpu.core_type = #tpu.core_type<tc>, window_params = [{transform_indices = @transform_0, window_bounds = array<i64: 128, 5>}, {transform_indices = @transform_1, window_bounds = array<i64: 5, 128>}, {transform_indices = @transform_2, window_bounds = array<i64: 5, 128, 128>}]} {
    %c0 = arith.constant 0 : index
    %c0_0 = arith.constant 0 : index
    %0 = vector.load %arg2[%c0, %c0_0] : memref<128x5xf32, #tpu.memory_space<vmem>>, vector<128x1xf32>
    %c0_1 = arith.constant 0 : index
    %c0_2 = arith.constant 0 : index
    %1 = vector.load %arg3[%c0_1, %c0_2] : memref<5x128xf32, #tpu.memory_space<vmem>>, vector<1x128xf32>
    %2 = vector.broadcast %0 : vector<128x1xf32> to vector<128x128xf32>
    %3 = vector.broadcast %1 : vector<1x128xf32> to vector<128x128xf32>
    %4 = arith.minimumf %2, %3 : vector<128x128xf32>
    %c0_3 = arith.constant 0 : index
    %c0_4 = arith.constant 0 : index
    %c0_5 = arith.constant 0 : index
    %5 = vector.load %arg4[%c0_3, %c0_4, %c0_5] : memref<5x128x128xf32, #tpu.memory_space<vmem>>, vector<1x128x128xf32>
    %6 = vector.shape_cast %5 : vector<1x128x128xf32> to vector<128x128xf32>
    %7 = vector.shape_cast %4 : vector<128x128xf32> to vector<1x128x128xf32>
    tpu.vector_store %arg4[%c0_3, %c0_4, %c0_5], %7 {strides = array<i32>} : memref<5x128x128xf32, #tpu.memory_space<vmem>>, vector<1x128x128xf32>,
    %c0_6 = arith.constant 0 : index
    %c1 = arith.constant 1 : index
    %8 = vector.load %arg2[%c0_6, %c1] : memref<128x5xf32, #tpu.memory_space<vmem>>, vector<128x1xf32>
    %c1_7 = arith.constant 1 : index
    %c0_8 = arith.constant 0 : index
    %9 = vector.load %arg3[%c1_7, %c0_8] : memref<5x128xf32, #tpu.memory_space<vmem>>, vector<1x128xf32>
    %10 = vector.broadcast %8 : vector<128x1xf32> to vector<128x128xf32>
    %11 = vector.broadcast %9 : vector<1x128xf32> to vector<128x128xf32>
    %12 = arith.minimumf %10, %11 : vector<128x128xf32>
    %c1_9 = arith.constant 1 : index
    %c0_10 = arith.constant 0 : index
    %c0_11 = arith.constant 0 : index
    %13 = vector.load %arg4[%c1_9, %c0_10, %c0_11] : memref<5x128x128xf32, #tpu.memory_space<vmem>>, vector<1x128x128xf32>
    %14 = vector.shape_cast %13 : vector<1x128x128xf32> to vector<128x128xf32>
    %15 = vector.shape_cast %12 : vector<128x128xf32> to vector<1x128x128xf32>
    tpu.vector_store %arg4[%c1_9, %c0_10, %c0_11], %15 {strides = array<i32>} : memref<5x128x128xf32, #tpu.memory_space<vmem>>, vector<1x128x128xf32>,
    %c0_12 = arith.constant 0 : index
    %c2 = arith.constant 2 : index
    %16 = vector.load %arg2[%c0_12, %c2] : memref<128x5xf32, #tpu.memory_space<vmem>>, vector<128x1xf32>
    %c2_13 = arith.constant 2 : index
    %c0_14 = arith.constant 0 : index
    %17 = vector.load %arg3[%c2_13, %c0_14] : memref<5x128xf32, #tpu.memory_space<vmem>>, vector<1x128xf32>
    %18 = vector.broadcast %16 : vector<128x1xf32> to vector<128x128xf32>
    %19 = vector.broadcast %17 : vector<1x128xf32> to vector<128x128xf32>
    %20 = arith.minimumf %18, %19 : vector<128x128xf32>
    %c2_15 = arith.constant 2 : index
    %c0_16 = arith.constant 0 : index
    %c0_17 = arith.constant 0 : index
    %21 = vector.load %arg4[%c2_15, %c0_16, %c0_17] : memref<5x128x128xf32, #tpu.memory_space<vmem>>, vector<1x128x128xf32>
    %22 = vector.shape_cast %21 : vector<1x128x128xf32> to vector<128x128xf32>
    %23 = vector.shape_cast %20 : vector<128x128xf32> to vector<1x128x128xf32>
    tpu.vector_store %arg4[%c2_15, %c0_16, %c0_17], %23 {strides = array<i32>} : memref<5x128x128xf32, #tpu.memory_space<vmem>>, vector<1x128x128xf32>,
    %c0_18 = arith.constant 0 : index
    %c3 = arith.constant 3 : index
    %24 = vector.load %arg2[%c0_18, %c3] : memref<128x5xf32, #tpu.memory_space<vmem>>, vector<128x1xf32>
    %c3_19 = arith.constant 3 : index
    %c0_20 = arith.constant 0 : index
    %25 = vector.load %arg3[%c3_19, %c0_20] : memref<5x128xf32, #tpu.memory_space<vmem>>, vector<1x128xf32>
    %26 = vector.broadcast %24 : vector<128x1xf32> to vector<128x128xf32>
    %27 = vector.broadcast %25 : vector<1x128xf32> to vector<128x128xf32>
    %28 = arith.maximumf %26, %27 : vector<128x128xf32>
    %c3_21 = arith.constant 3 : index
    %c0_22 = arith.constant 0 : index
    %c0_23 = arith.constant 0 : index
    %29 = vector.load %arg4[%c3_21, %c0_22, %c0_23] : memref<5x128x128xf32, #tpu.memory_space<vmem>>, vector<1x128x128xf32>
    %30 = vector.shape_cast %29 : vector<1x128x128xf32> to vector<128x128xf32>
    %31 = vector.shape_cast %28 : vector<128x128xf32> to vector<1x128x128xf32>
    tpu.vector_store %arg4[%c3_21, %c0_22, %c0_23], %31 {strides = array<i32>} : memref<5x128x128xf32, #tpu.memory_space<vmem>>, vector<1x128x128xf32>,
    %c0_24 = arith.constant 0 : index
    %c4 = arith.constant 4 : index
    %32 = vector.load %arg2[%c0_24, %c4] : memref<128x5xf32, #tpu.memory_space<vmem>>, vector<128x1xf32>
    %c4_25 = arith.constant 4 : index
    %c0_26 = arith.constant 0 : index
    %33 = vector.load %arg3[%c4_25, %c0_26] : memref<5x128xf32, #tpu.memory_space<vmem>>, vector<1x128xf32>
    %34 = vector.broadcast %32 : vector<128x1xf32> to vector<128x128xf32>
    %35 = vector.broadcast %33 : vector<1x128xf32> to vector<128x128xf32>
    %36 = arith.maximumf %34, %35 : vector<128x128xf32>
    %c4_27 = arith.constant 4 : index
    %c0_28 = arith.constant 0 : index
    %c0_29 = arith.constant 0 : index
    %37 = vector.load %arg4[%c4_27, %c0_28, %c0_29] : memref<5x128x128xf32, #tpu.memory_space<vmem>>, vector<1x128x128xf32>
    %38 = vector.shape_cast %37 : vector<1x128x128xf32> to vector<128x128xf32>
    %39 = vector.shape_cast %36 : vector<128x128xf32> to vector<1x128x128xf32>
    tpu.vector_store %arg4[%c4_27, %c0_28, %c0_29], %39 {strides = array<i32>} : memref<5x128x128xf32, #tpu.memory_space<vmem>>, vector<1x128x128xf32>,
    return
  }
  func.func @transform_0(%arg0: i32, %arg1: i32) -> (i32, i32) {
    %c0_i32 = arith.constant 0 : i32
    %c0_i32_0 = arith.constant 0 : i32
    return %arg0, %c0_i32 : i32, i32
  }
  func.func @transform_1(%arg0: i32, %arg1: i32) -> (i32, i32) {
    %c0_i32 = arith.constant 0 : i32
    %c0_i32_0 = arith.constant 0 : i32
    return %c0_i32, %arg1 : i32, i32
  }
  func.func @transform_2(%arg0: i32, %arg1: i32) -> (i32, i32, i32) {
    %c0_i32 = arith.constant 0 : i32
    %c0_i32_0 = arith.constant 0 : i32
    return %c0_i32, %arg0, %arg1 : i32, i32, i32
  }
}

</mosaic_0001>

<llo_original>
// kernel: tpu_custom_call.1
$region0: #{tpu_custom_call.1}
  #allocation0 [shape = 'u32[]', space=smem, size = 0x4, offset = 0x4, fixed_abs, tag = 'smem constant byte address 0x4 - core index']
  #allocation1 [shape = 'u32[144,128]{1,0:T(1,128)}', space=vmem, size = 0x12000, scoped, tag = 'internal scratch']
  %s0 = inlined_call_operand.vmem [shape: f32[128,5], index: 0, kind: input, shape index: {}]
  %s1 = inlined_call_operand.vmem [shape: f32[5,128], index: 1, kind: input, shape index: {}]
  %s2 = inlined_call_operand.hbm [shape: f32[5,128,128], index: 2, kind: output, shape index: {}]
  %s3 = sld [smem:[#allocation0]]
  $region18: #{tpu_custom_call.1} parent=0
    _
  %s5 = ssub.s32 1, %s3
  %s6 = scalar_select 0, %s5, %s3
  $region1: #{tpu_custom_call.1} parent=0
    #allocation2 [shape = 'u8[327680]{0}', space=vmem, size = 0x50000, scoped, tag = 'output window, operand 0, single buffered']
    #allocation3 [shape = 's32[1]{0}', space=sflag, size = 0x4, scoped, tag = 'scoped memory for tpu_custom_call.1']
    %7 = vsyncpa [#allocation3], 0
    // Predicated region
    $region2: #{tpu_custom_call.1} parent=1 // pred_check
      _
    $region3: #{tpu_custom_call.1} parent=1 // pred_check_branch
      %9 = sbr.rel (0) target = $region5
    $region4: #{tpu_custom_call.1} parent=1 // pred_region
      _
    $region5: #{tpu_custom_call.1} parent=1 // pred_fallthru
      _
    // Predicated region
    $region6: #{tpu_custom_call.1} parent=1 // pred_check
      _
    $region7: #{tpu_custom_call.1} parent=1 // pred_check_branch
      %11 = sbr.rel (0) target = $region9
    $region8: #{tpu_custom_call.1} parent=1 // pred_region
      _
    $region9: #{tpu_custom_call.1} parent=1 // pred_fallthru
      _
    %v12 = vld [vmem:[%s0] sm:$0xff]
    %v13 = vld [vmem:[%s0 + $0x8] sm:$0xff]
    %v14 = vld [vmem:[%s0 + $0x10] sm:$0xff]
    %v15 = vld [vmem:[%s0 + $0x18] sm:$0xff]
    %v16 = vld [vmem:[%s0 + $0x20] sm:$0xff]
    %v17 = vld [vmem:[%s0 + $0x28] sm:$0xff]
    %v18 = vld [vmem:[%s0 + $0x30] sm:$0xff]
    %v19 = vld [vmem:[%s0 + $0x38] sm:$0xff]
    %v20 = vld [vmem:[%s0 + $0x40] sm:$0xff]
    %v21 = vld [vmem:[%s0 + $0x48] sm:$0xff]
    %v22 = vld [vmem:[%s0 + $0x50] sm:$0xff]
    %v23 = vld [vmem:[%s0 + $0x58] sm:$0xff]
    %v24 = vld [vmem:[%s0 + $0x60] sm:$0xff]
    %v25 = vld [vmem:[%s0 + $0x68] sm:$0xff]
    %v26 = vld [vmem:[%s0 + $0x70] sm:$0xff]
    %v27 = vld [vmem:[%s0 + $0x78] sm:$0xff]
    %v28 = vld [vmem:[%s1] sm:$0x1]
    %30 = vset.pattern.permute.xlu0 0
    %31 = vperm.xlu0 %30, %v12
    %v32 = vpop.permute.xlu0 %31
    %35 = vset.pattern.permute.xlu0 0
    %36 = vperm.xlu0 %35, %v13
    %v37 = vpop.permute.xlu0 %36
    %40 = vset.pattern.permute.xlu0 0
    %41 = vperm.xlu0 %40, %v14
    %v42 = vpop.permute.xlu0 %41
    %45 = vset.pattern.permute.xlu0 0
    %46 = vperm.xlu0 %45, %v15
    %v47 = vpop.permute.xlu0 %46
    %50 = vset.pattern.permute.xlu0 0
    %51 = vperm.xlu0 %50, %v16
    %v52 = vpop.permute.xlu0 %51
    %55 = vset.pattern.permute.xlu0 0
    %56 = vperm.xlu0 %55, %v17
    %v57 = vpop.permute.xlu0 %56
    %60 = vset.pattern.permute.xlu0 0
    %61 = vperm.xlu0 %60, %v18
    %v62 = vpop.permute.xlu0 %61
    %65 = vset.pattern.permute.xlu0 0
    %66 = vperm.xlu0 %65, %v19
    %v67 = vpop.permute.xlu0 %66
    %70 = vset.pattern.permute.xlu0 0
    %71 = vperm.xlu0 %70, %v20
    %v72 = vpop.permute.xlu0 %71
    %75 = vset.pattern.permute.xlu0 0
    %76 = vperm.xlu0 %75, %v21
    %v77 = vpop.permute.xlu0 %76
    %80 = vset.pattern.permute.xlu0 0
    %81 = vperm.xlu0 %80, %v22
    %v82 = vpop.permute.xlu0 %81
    %85 = vset.pattern.permute.xlu0 0
    %86 = vperm.xlu0 %85, %v23
    %v87 = vpop.permute.xlu0 %86
    %90 = vset.pattern.permute.xlu0 0
    %91 = vperm.xlu0 %90, %v24
    %v92 = vpop.permute.xlu0 %91
    %95 = vset.pattern.permute.xlu0 0
    %96 = vperm.xlu0 %95, %v25
    %v97 = vpop.permute.xlu0 %96
    %100 = vset.pattern.permute.xlu0 0
    %101 = vperm.xlu0 %100, %v26
    %v102 = vpop.permute.xlu0 %101
    %105 = vset.pattern.permute.xlu0 0
    %106 = vperm.xlu0 %105, %v27
    %v107 = vpop.permute.xlu0 %106
    %v109 = vlaneseq
    %v110 = vshrl.u32 %v109, 7
    %v111 = vsub.s32 0, %v110
    %v112 = vrot.slane %v28, %v111
    %v113 = vmin.f32 %v32, %v112
    %v114 = vmin.f32 %v37, %v112
    %v115 = vmin.f32 %v42, %v112
    %v116 = vmin.f32 %v47, %v112
    %v117 = vmin.f32 %v52, %v112
    %v118 = vmin.f32 %v57, %v112
    %v119 = vmin.f32 %v62, %v112
    %v120 = vmin.f32 %v67, %v112
    %v121 = vmin.f32 %v72, %v112
    %v122 = vmin.f32 %v77, %v112
    %v123 = vmin.f32 %v82, %v112
    %v124 = vmin.f32 %v87, %v112
    %v125 = vmin.f32 %v92, %v112
    %v126 = vmin.f32 %v97, %v112
    %v127 = vmin.f32 %v102, %v112
    %v128 = vmin.f32 %v107, %v112
    %129 = vst [vmem:[#allocation2] sm:$0xff] %v113
    %130 = vst [vmem:[#allocation2 + $0x8] sm:$0xff] %v114
    %131 = vst [vmem:[#allocation2 + $0x10] sm:$0xff] %v115
    %132 = vst [vmem:[#allocation2 + $0x18] sm:$0xff] %v116
    %133 = vst [vmem:[#allocation2 + $0x20] sm:$0xff] %v117
    %134 = vst [vmem:[#allocation2 + $0x28] sm:$0xff] %v118
    %135 = vst [vmem:[#allocation2 + $0x30] sm:$0xff] %v119
    %136 = vst [vmem:[#allocation2 + $0x38] sm:$0xff] %v120
    %137 = vst [vmem:[#allocation2 + $0x40] sm:$0xff] %v121
    %138 = vst [vmem:[#allocation2 + $0x48] sm:$0xff] %v122
    %139 = vst [vmem:[#allocation2 + $0x50] sm:$0xff] %v123
    %140 = vst [vmem:[#allocation2 + $0x58] sm:$0xff] %v124
    %141 = vst [vmem:[#allocation2 + $0x60] sm:$0xff] %v125
    %142 = vst [vmem:[#allocation2 + $0x68] sm:$0xff] %v126
    %143 = vst [vmem:[#allocation2 + $0x70] sm:$0xff] %v127
    %144 = vst [vmem:[#allocation2 + $0x78] sm:$0xff] %v128
    %v145 = vld [vmem:[%s0] sm:$0xff]
    %v146 = vld [vmem:[%s0 + $0x8] sm:$0xff]
    %v147 = vld [vmem:[%s0 + $0x10] sm:$0xff]
    %v148 = vld [vmem:[%s0 + $0x18] sm:$0xff]
    %v149 = vld [vmem:[%s0 + $0x20] sm:$0xff]
    %v150 = vld [vmem:[%s0 + $0x28] sm:$0xff]
    %v151 = vld [vmem:[%s0 + $0x30] sm:$0xff]
    %v152 = vld [vmem:[%s0 + $0x38] sm:$0xff]
    %v153 = vld [vmem:[%s0 + $0x40] sm:$0xff]
    %v154 = vld [vmem:[%s0 + $0x48] sm:$0xff]
    %v155 = vld [vmem:[%s0 + $0x50] sm:$0xff]
    %v156 = vld [vmem:[%s0 + $0x58] sm:$0xff]
    %v157 = vld [vmem:[%s0 + $0x60] sm:$0xff]
    %v158 = vld [vmem:[%s0 + $0x68] sm:$0xff]
    %v159 = vld [vmem:[%s0 + $0x70] sm:$0xff]
    %v160 = vld [vmem:[%s0 + $0x78] sm:$0xff]
    %v161 = vld [vmem:[%s1 + $0x1] sm:$0x1]
    %163 = vset.pattern.permute.xlu0 1
    %164 = vperm.xlu0 %163, %v145
    %v165 = vpop.permute.xlu0 %164
    %168 = vset.pattern.permute.xlu0 1
    %169 = vperm.xlu0 %168, %v146
    %v170 = vpop.permute.xlu0 %169
    %173 = vset.pattern.permute.xlu0 1
    %174 = vperm.xlu0 %173, %v147
    %v175 = vpop.permute.xlu0 %174
    %178 = vset.pattern.permute.xlu0 1
    %179 = vperm.xlu0 %178, %v148
    %v180 = vpop.permute.xlu0 %179
    %183 = vset.pattern.permute.xlu0 1
    %184 = vperm.xlu0 %183, %v149
    %v185 = vpop.permute.xlu0 %184
    %188 = vset.pattern.permute.xlu0 1
    %189 = vperm.xlu0 %188, %v150
    %v190 = vpop.permute.xlu0 %189
    %193 = vset.pattern.permute.xlu0 1
    %194 = vperm.xlu0 %193, %v151
    %v195 = vpop.permute.xlu0 %194
    %198 = vset.pattern.permute.xlu0 1
    %199 = vperm.xlu0 %198, %v152
    %v200 = vpop.permute.xlu0 %199
    %203 = vset.pattern.permute.xlu0 1
    %204 = vperm.xlu0 %203, %v153
    %v205 = vpop.permute.xlu0 %204
    %208 = vset.pattern.permute.xlu0 1
    %209 = vperm.xlu0 %208, %v154
    %v210 = vpop.permute.xlu0 %209
    %213 = vset.pattern.permute.xlu0 1
    %214 = vperm.xlu0 %213, %v155
    %v215 = vpop.permute.xlu0 %214
    %218 = vset.pattern.permute.xlu0 1
    %219 = vperm.xlu0 %218, %v156
    %v220 = vpop.permute.xlu0 %219
    %223 = vset.pattern.permute.xlu0 1
    %224 = vperm.xlu0 %223, %v157
    %v225 = vpop.permute.xlu0 %224
    %228 = vset.pattern.permute.xlu0 1
    %229 = vperm.xlu0 %228, %v158
    %v230 = vpop.permute.xlu0 %229
    %233 = vset.pattern.permute.xlu0 1
    %234 = vperm.xlu0 %233, %v159
    %v235 = vpop.permute.xlu0 %234
    %238 = vset.pattern.permute.xlu0 1
    %239 = vperm.xlu0 %238, %v160
    %v240 = vpop.permute.xlu0 %239
    %v242 = vlaneseq
    %v243 = vshrl.u32 %v242, 7
    %v244 = vsub.s32 0, %v243
    %v245 = vrot.slane %v161, %v244
    %v246 = vmin.f32 %v165, %v245
    %v247 = vmin.f32 %v170, %v245
    %v248 = vmin.f32 %v175, %v245
    %v249 = vmin.f32 %v180, %v245
    %v250 = vmin.f32 %v185, %v245
    %v251 = vmin.f32 %v190, %v245
    %v252 = vmin.f32 %v195, %v245
    %v253 = vmin.f32 %v200, %v245
    %v254 = vmin.f32 %v205, %v245
    %v255 = vmin.f32 %v210, %v245
    %v256 = vmin.f32 %v215, %v245
    %v257 = vmin.f32 %v220, %v245
    %v258 = vmin.f32 %v225, %v245
    %v259 = vmin.f32 %v230, %v245
    %v260 = vmin.f32 %v235, %v245
    %v261 = vmin.f32 %v240, %v245
    %s262 = scalar_lea.vmem [#allocation2], 128
    %263 = vst [vmem:[%s262] sm:$0xff] %v246
    %264 = vst [vmem:[%s262 + $0x8] sm:$0xff] %v247
    %265 = vst [vmem:[%s262 + $0x10] sm:$0xff] %v248
    %266 = vst [vmem:[%s262 + $0x18] sm:$0xff] %v249
    %267 = vst [vmem:[%s262 + $0x20] sm:$0xff] %v250
    %268 = vst [vmem:[%s262 + $0x28] sm:$0xff] %v251
    %269 = vst [vmem:[%s262 + $0x30] sm:$0xff] %v252
    %270 = vst [vmem:[%s262 + $0x38] sm:$0xff] %v253
    %271 = vst [vmem:[%s262 + $0x40] sm:$0xff] %v254
    %272 = vst [vmem:[%s262 + $0x48] sm:$0xff] %v255
    %273 = vst [vmem:[%s262 + $0x50] sm:$0xff] %v256
    %274 = vst [vmem:[%s262 + $0x58] sm:$0xff] %v257
    %275 = vst [vmem:[%s262 + $0x60] sm:$0xff] %v258
    %276 = vst [vmem:[%s262 + $0x68] sm:$0xff] %v259
    %277 = vst [vmem:[%s262 + $0x70] sm:$0xff] %v260
    %278 = vst [vmem:[%s262 + $0x78] sm:$0xff] %v261
    %v279 = vld [vmem:[%s0] sm:$0xff]
    %v280 = vld [vmem:[%s0 + $0x8] sm:$0xff]
    %v281 = vld [vmem:[%s0 + $0x10] sm:$0xff]
    %v282 = vld [vmem:[%s0 + $0x18] sm:$0xff]
    %v283 = vld [vmem:[%s0 + $0x20] sm:$0xff]
    %v284 = vld [vmem:[%s0 + $0x28] sm:$0xff]
    %v285 = vld [vmem:[%s0 + $0x30] sm:$0xff]
    %v286 = vld [vmem:[%s0 + $0x38] sm:$0xff]
    %v287 = vld [vmem:[%s0 + $0x40] sm:$0xff]
    %v288 = vld [vmem:[%s0 + $0x48] sm:$0xff]
    %v289 = vld [vmem:[%s0 + $0x50] sm:$0xff]
    %v290 = vld [vmem:[%s0 + $0x58] sm:$0xff]
    %v291 = vld [vmem:[%s0 + $0x60] sm:$0xff]
    %v292 = vld [vmem:[%s0 + $0x68] sm:$0xff]
    %v293 = vld [vmem:[%s0 + $0x70] sm:$0xff]
    %v294 = vld [vmem:[%s0 + $0x78] sm:$0xff]
    %v295 = vld [vmem:[%s1 + $0x2] sm:$0x1]
    %297 = vset.pattern.permute.xlu0 2
    %298 = vperm.xlu0 %297, %v279
    %v299 = vpop.permute.xlu0 %298
    %302 = vset.pattern.permute.xlu0 2
    %303 = vperm.xlu0 %302, %v280
    %v304 = vpop.permute.xlu0 %303
    %307 = vset.pattern.permute.xlu0 2
    %308 = vperm.xlu0 %307, %v281
    %v309 = vpop.permute.xlu0 %308
    %312 = vset.pattern.permute.xlu0 2
    %313 = vperm.xlu0 %312, %v282
    %v314 = vpop.permute.xlu0 %313
    %317 = vset.pattern.permute.xlu0 2
    %318 = vperm.xlu0 %317, %v283
    %v319 = vpop.permute.xlu0 %318
    %322 = vset.pattern.permute.xlu0 2
    %323 = vperm.xlu0 %322, %v284
    %v324 = vpop.permute.xlu0 %323
    %327 = vset.pattern.permute.xlu0 2
    %328 = vperm.xlu0 %327, %v285
    %v329 = vpop.permute.xlu0 %328
    %332 = vset.pattern.permute.xlu0 2
    %333 = vperm.xlu0 %332, %v286
    %v334 = vpop.permute.xlu0 %333
    %337 = vset.pattern.permute.xlu0 2
    %338 = vperm.xlu0 %337, %v287
    %v339 = vpop.permute.xlu0 %338
    %342 = vset.pattern.permute.xlu0 2
    %343 = vperm.xlu0 %342, %v288
    %v344 = vpop.permute.xlu0 %343
    %347 = vset.pattern.permute.xlu0 2
    %348 = vperm.xlu0 %347, %v289
    %v349 = vpop.permute.xlu0 %348
    %352 = vset.pattern.permute.xlu0 2
    %353 = vperm.xlu0 %352, %v290
    %v354 = vpop.permute.xlu0 %353
    %357 = vset.pattern.permute.xlu0 2
    %358 = vperm.xlu0 %357, %v291
    %v359 = vpop.permute.xlu0 %358
    %362 = vset.pattern.permute.xlu0 2
    %363 = vperm.xlu0 %362, %v292
    %v364 = vpop.permute.xlu0 %363
    %367 = vset.pattern.permute.xlu0 2
    %368 = vperm.xlu0 %367, %v293
    %v369 = vpop.permute.xlu0 %368
    %372 = vset.pattern.permute.xlu0 2
    %373 = vperm.xlu0 %372, %v294
    %v374 = vpop.permute.xlu0 %373
    %v376 = vlaneseq
    %v377 = vshrl.u32 %v376, 7
    %v378 = vsub.s32 0, %v377
    %v379 = vrot.slane %v295, %v378
    %v380 = vmin.f32 %v299, %v379
    %v381 = vmin.f32 %v304, %v379
    %v382 = vmin.f32 %v309, %v379
    %v383 = vmin.f32 %v314, %v379
    %v384 = vmin.f32 %v319, %v379
    %v385 = vmin.f32 %v324, %v379
    %v386 = vmin.f32 %v329, %v379
    %v387 = vmin.f32 %v334, %v379
    %v388 = vmin.f32 %v339, %v379
    %v389 = vmin.f32 %v344, %v379
    %v390 = vmin.f32 %v349, %v379
    %v391 = vmin.f32 %v354, %v379
    %v392 = vmin.f32 %v359, %v379
    %v393 = vmin.f32 %v364, %v379
    %v394 = vmin.f32 %v369, %v379
    %v395 = vmin.f32 %v374, %v379
    %s396 = scalar_lea.vmem [#allocation2], 256
    %397 = vst [vmem:[%s396] sm:$0xff] %v380
    %398 = vst [vmem:[%s396 + $0x8] sm:$0xff] %v381
    %399 = vst [vmem:[%s396 + $0x10] sm:$0xff] %v382
    %400 = vst [vmem:[%s396 + $0x18] sm:$0xff] %v383
    %401 = vst [vmem:[%s396 + $0x20] sm:$0xff] %v384
    %402 = vst [vmem:[%s396 + $0x28] sm:$0xff] %v385
    %403 = vst [vmem:[%s396 + $0x30] sm:$0xff] %v386
    %404 = vst [vmem:[%s396 + $0x38] sm:$0xff] %v387
    %405 = vst [vmem:[%s396 + $0x40] sm:$0xff] %v388
    %406 = vst [vmem:[%s396 + $0x48] sm:$0xff] %v389
    %407 = vst [vmem:[%s396 + $0x50] sm:$0xff] %v390
    %408 = vst [vmem:[%s396 + $0x58] sm:$0xff] %v391
    %409 = vst [vmem:[%s396 + $0x60] sm:$0xff] %v392
    %410 = vst [vmem:[%s396 + $0x68] sm:$0xff] %v393
    %411 = vst [vmem:[%s396 + $0x70] sm:$0xff] %v394
    %412 = vst [vmem:[%s396 + $0x78] sm:$0xff] %v395
    %v413 = vld [vmem:[%s0] sm:$0xff]
    %v414 = vld [vmem:[%s0 + $0x8] sm:$0xff]
    %v415 = vld [vmem:[%s0 + $0x10] sm:$0xff]
    %v416 = vld [vmem:[%s0 + $0x18] sm:$0xff]
    %v417 = vld [vmem:[%s0 + $0x20] sm:$0xff]
    %v418 = vld [vmem:[%s0 + $0x28] sm:$0xff]
    %v419 = vld [vmem:[%s0 + $0x30] sm:$0xff]
    %v420 = vld [vmem:[%s0 + $0x38] sm:$0xff]
    %v421 = vld [vmem:[%s0 + $0x40] sm:$0xff]
    %v422 = vld [vmem:[%s0 + $0x48] sm:$0xff]
    %v423 = vld [vmem:[%s0 + $0x50] sm:$0xff]
    %v424 = vld [vmem:[%s0 + $0x58] sm:$0xff]
    %v425 = vld [vmem:[%s0 + $0x60] sm:$0xff]
    %v426 = vld [vmem:[%s0 + $0x68] sm:$0xff]
    %v427 = vld [vmem:[%s0 + $0x70] sm:$0xff]
    %v428 = vld [vmem:[%s0 + $0x78] sm:$0xff]
    %v429 = vld [vmem:[%s1 + $0x3] sm:$0x1]
    %431 = vset.pattern.permute.xlu0 3
    %432 = vperm.xlu0 %431, %v413
    %v433 = vpop.permute.xlu0 %432
    %436 = vset.pattern.permute.xlu0 3
    %437 = vperm.xlu0 %436, %v414
    %v438 = vpop.permute.xlu0 %437
    %441 = vset.pattern.permute.xlu0 3
    %442 = vperm.xlu0 %441, %v415
    %v443 = vpop.permute.xlu0 %442
    %446 = vset.pattern.permute.xlu0 3
    %447 = vperm.xlu0 %446, %v416
    %v448 = vpop.permute.xlu0 %447
    %451 = vset.pattern.permute.xlu0 3
    %452 = vperm.xlu0 %451, %v417
    %v453 = vpop.permute.xlu0 %452
    %456 = vset.pattern.permute.xlu0 3
    %457 = vperm.xlu0 %456, %v418
    %v458 = vpop.permute.xlu0 %457
    %461 = vset.pattern.permute.xlu0 3
    %462 = vperm.xlu0 %461, %v419
    %v463 = vpop.permute.xlu0 %462
    %466 = vset.pattern.permute.xlu0 3
    %467 = vperm.xlu0 %466, %v420
    %v468 = vpop.permute.xlu0 %467
    %471 = vset.pattern.permute.xlu0 3
    %472 = vperm.xlu0 %471, %v421
    %v473 = vpop.permute.xlu0 %472
    %476 = vset.pattern.permute.xlu0 3
    %477 = vperm.xlu0 %476, %v422
    %v478 = vpop.permute.xlu0 %477
    %481 = vset.pattern.permute.xlu0 3
    %482 = vperm.xlu0 %481, %v423
    %v483 = vpop.permute.xlu0 %482
    %486 = vset.pattern.permute.xlu0 3
    %487 = vperm.xlu0 %486, %v424
    %v488 = vpop.permute.xlu0 %487
    %491 = vset.pattern.permute.xlu0 3
    %492 = vperm.xlu0 %491, %v425
    %v493 = vpop.permute.xlu0 %492
    %496 = vset.pattern.permute.xlu0 3
    %497 = vperm.xlu0 %496, %v426
    %v498 = vpop.permute.xlu0 %497
    %501 = vset.pattern.permute.xlu0 3
    %502 = vperm.xlu0 %501, %v427
    %v503 = vpop.permute.xlu0 %502
    %506 = vset.pattern.permute.xlu0 3
    %507 = vperm.xlu0 %506, %v428
    %v508 = vpop.permute.xlu0 %507
    %v510 = vlaneseq
    %v511 = vshrl.u32 %v510, 7
    %v512 = vsub.s32 0, %v511
    %v513 = vrot.slane %v429, %v512
    %v514 = vmax.f32 %v433, %v513
    %v515 = vmax.f32 %v438, %v513
    %v516 = vmax.f32 %v443, %v513
    %v517 = vmax.f32 %v448, %v513
    %v518 = vmax.f32 %v453, %v513
    %v519 = vmax.f32 %v458, %v513
    %v520 = vmax.f32 %v463, %v513
    %v521 = vmax.f32 %v468, %v513
    %v522 = vmax.f32 %v473, %v513
    %v523 = vmax.f32 %v478, %v513
    %v524 = vmax.f32 %v483, %v513
    %v525 = vmax.f32 %v488, %v513
    %v526 = vmax.f32 %v493, %v513
    %v527 = vmax.f32 %v498, %v513
    %v528 = vmax.f32 %v503, %v513
    %v529 = vmax.f32 %v508, %v513
    %s530 = scalar_lea.vmem [#allocation2], 384
    %531 = vst [vmem:[%s530] sm:$0xff] %v514
    %532 = vst [vmem:[%s530 + $0x8] sm:$0xff] %v515
    %533 = vst [vmem:[%s530 + $0x10] sm:$0xff] %v516
    %534 = vst [vmem:[%s530 + $0x18] sm:$0xff] %v517
    %535 = vst [vmem:[%s530 + $0x20] sm:$0xff] %v518
    %536 = vst [vmem:[%s530 + $0x28] sm:$0xff] %v519
    %537 = vst [vmem:[%s530 + $0x30] sm:$0xff] %v520
    %538 = vst [vmem:[%s530 + $0x38] sm:$0xff] %v521
    %539 = vst [vmem:[%s530 + $0x40] sm:$0xff] %v522
    %540 = vst [vmem:[%s530 + $0x48] sm:$0xff] %v523
    %541 = vst [vmem:[%s530 + $0x50] sm:$0xff] %v524
    %542 = vst [vmem:[%s530 + $0x58] sm:$0xff] %v525
    %543 = vst [vmem:[%s530 + $0x60] sm:$0xff] %v526
    %544 = vst [vmem:[%s530 + $0x68] sm:$0xff] %v527
    %545 = vst [vmem:[%s530 + $0x70] sm:$0xff] %v528
    %546 = vst [vmem:[%s530 + $0x78] sm:$0xff] %v529
    %v547 = vld [vmem:[%s0] sm:$0xff]
    %v548 = vld [vmem:[%s0 + $0x8] sm:$0xff]
    %v549 = vld [vmem:[%s0 + $0x10] sm:$0xff]
    %v550 = vld [vmem:[%s0 + $0x18] sm:$0xff]
    %v551 = vld [vmem:[%s0 + $0x20] sm:$0xff]
    %v552 = vld [vmem:[%s0 + $0x28] sm:$0xff]
    %v553 = vld [vmem:[%s0 + $0x30] sm:$0xff]
    %v554 = vld [vmem:[%s0 + $0x38] sm:$0xff]
    %v555 = vld [vmem:[%s0 + $0x40] sm:$0xff]
    %v556 = vld [vmem:[%s0 + $0x48] sm:$0xff]
    %v557 = vld [vmem:[%s0 + $0x50] sm:$0xff]
    %v558 = vld [vmem:[%s0 + $0x58] sm:$0xff]
    %v559 = vld [vmem:[%s0 + $0x60] sm:$0xff]
    %v560 = vld [vmem:[%s0 + $0x68] sm:$0xff]
    %v561 = vld [vmem:[%s0 + $0x70] sm:$0xff]
    %v562 = vld [vmem:[%s0 + $0x78] sm:$0xff]
    %v563 = vld [vmem:[%s1 + $0x4] sm:$0x1]
    %565 = vset.pattern.permute.xlu0 4
    %566 = vperm.xlu0 %565, %v547
    %v567 = vpop.permute.xlu0 %566
    %570 = vset.pattern.permute.xlu0 4
    %571 = vperm.xlu0 %570, %v548
    %v572 = vpop.permute.xlu0 %571
    %575 = vset.pattern.permute.xlu0 4
    %576 = vperm.xlu0 %575, %v549
    %v577 = vpop.permute.xlu0 %576
    %580 = vset.pattern.permute.xlu0 4
    %581 = vperm.xlu0 %580, %v550
    %v582 = vpop.permute.xlu0 %581
    %585 = vset.pattern.permute.xlu0 4
    %586 = vperm.xlu0 %585, %v551
    %v587 = vpop.permute.xlu0 %586
    %590 = vset.pattern.permute.xlu0 4
    %591 = vperm.xlu0 %590, %v552
    %v592 = vpop.permute.xlu0 %591
    %595 = vset.pattern.permute.xlu0 4
    %596 = vperm.xlu0 %595, %v553
    %v597 = vpop.permute.xlu0 %596
    %600 = vset.pattern.permute.xlu0 4
    %601 = vperm.xlu0 %600, %v554
    %v602 = vpop.permute.xlu0 %601
    %605 = vset.pattern.permute.xlu0 4
    %606 = vperm.xlu0 %605, %v555
    %v607 = vpop.permute.xlu0 %606
    %610 = vset.pattern.permute.xlu0 4
    %611 = vperm.xlu0 %610, %v556
    %v612 = vpop.permute.xlu0 %611
    %615 = vset.pattern.permute.xlu0 4
    %616 = vperm.xlu0 %615, %v557
    %v617 = vpop.permute.xlu0 %616
    %620 = vset.pattern.permute.xlu0 4
    %621 = vperm.xlu0 %620, %v558
    %v622 = vpop.permute.xlu0 %621
    %625 = vset.pattern.permute.xlu0 4
    %626 = vperm.xlu0 %625, %v559
    %v627 = vpop.permute.xlu0 %626
    %630 = vset.pattern.permute.xlu0 4
    %631 = vperm.xlu0 %630, %v560
    %v632 = vpop.permute.xlu0 %631
    %635 = vset.pattern.permute.xlu0 4
    %636 = vperm.xlu0 %635, %v561
    %v637 = vpop.permute.xlu0 %636
    %640 = vset.pattern.permute.xlu0 4
    %641 = vperm.xlu0 %640, %v562
    %v642 = vpop.permute.xlu0 %641
    %v644 = vlaneseq
    %v645 = vshrl.u32 %v644, 7
    %v646 = vsub.s32 0, %v645
    %v647 = vrot.slane %v563, %v646
    %v648 = vmax.f32 %v567, %v647
    %v649 = vmax.f32 %v572, %v647
    %v650 = vmax.f32 %v577, %v647
    %v651 = vmax.f32 %v582, %v647
    %v652 = vmax.f32 %v587, %v647
    %v653 = vmax.f32 %v592, %v647
    %v654 = vmax.f32 %v597, %v647
    %v655 = vmax.f32 %v602, %v647
    %v656 = vmax.f32 %v607, %v647
    %v657 = vmax.f32 %v612, %v647
    %v658 = vmax.f32 %v617, %v647
    %v659 = vmax.f32 %v622, %v647
    %v660 = vmax.f32 %v627, %v647
    %v661 = vmax.f32 %v632, %v647
    %v662 = vmax.f32 %v637, %v647
    %v663 = vmax.f32 %v642, %v647
    %s664 = scalar_lea.vmem [#allocation2], 512
    %665 = vst [vmem:[%s664] sm:$0xff] %v648
    %666 = vst [vmem:[%s664 + $0x8] sm:$0xff] %v649
    %667 = vst [vmem:[%s664 + $0x10] sm:$0xff] %v650
    %668 = vst [vmem:[%s664 + $0x18] sm:$0xff] %v651
    %669 = vst [vmem:[%s664 + $0x20] sm:$0xff] %v652
    %670 = vst [vmem:[%s664 + $0x28] sm:$0xff] %v653
    %671 = vst [vmem:[%s664 + $0x30] sm:$0xff] %v654
    %672 = vst [vmem:[%s664 + $0x38] sm:$0xff] %v655
    %673 = vst [vmem:[%s664 + $0x40] sm:$0xff] %v656
    %674 = vst [vmem:[%s664 + $0x48] sm:$0xff] %v657
    %675 = vst [vmem:[%s664 + $0x50] sm:$0xff] %v658
    %676 = vst [vmem:[%s664 + $0x58] sm:$0xff] %v659
    %677 = vst [vmem:[%s664 + $0x60] sm:$0xff] %v660
    %678 = vst [vmem:[%s664 + $0x68] sm:$0xff] %v661
    %679 = vst [vmem:[%s664 + $0x70] sm:$0xff] %v662
    %680 = vst [vmem:[%s664 + $0x78] sm:$0xff] %v663
    // Predicated region
    $region10: #{tpu_custom_call.1} parent=1 // pred_check
      _
    $region11: #{tpu_custom_call.1} parent=1 // pred_check_branch
      %682 = sbr.rel (0) target = $region13
    $region12: #{tpu_custom_call.1} parent=1 // pred_region
      %s684 = ssub.s32 10240, 10240
      %685 = vsyncadd [#allocation3], %s684
      %s686 = sshll.u32 [#allocation2], 4
      %s687 = int_to_ptr.vmem [resolvable:$true] %s686
      %692 = dma.vmem_to_hbm [thread:$0]  %s687, 10240, %s2, [#allocation3], 128, 128, 8
    $region13: #{tpu_custom_call.1} parent=1 // pred_fallthru
      _
    // Predicated region
    $region14: #{tpu_custom_call.1} parent=1 // pred_check
      _
    $region15: #{tpu_custom_call.1} parent=1 // pred_check_branch
      %694 = sbr.rel (0) target = $region17
    $region16: #{tpu_custom_call.1} parent=1 // pred_region
      %695 = dma.done [#allocation3], 10240
    $region17: #{tpu_custom_call.1} parent=1 // pred_fallthru
      _
    %696 = vsyncpa [#allocation3], 1

</llo_original>
